<compile_context>
chip_gen: v7x
topology: tpu7x:2x2x1
jax: 0.10.0
libtpu: 0.0.40
codegen_flags: <defaults>
</compile_context>

<pallas_src>
import functools

import jax
import jax.numpy as jnp
from jax.experimental import pallas as pl
from jax.experimental.pallas import tpu as pltpu


def _affine_style_kernel(w_ref, a_ref, b_ref, out_ref):
    # w_ref:   (tb, D)   latent rows for this batch tile
    # a_ref:   (D, tn)   transposed (and lane-padded) Linear weight columns
    # b_ref:   (1, tn)   Linear bias slice
    # out_ref: (tb, tn)  style vectors (lane-dense)
    style = jnp.dot(w_ref[...], a_ref[...], preferred_element_type=jnp.float32)
    out_ref[...] = (style + b_ref[...]).astype(out_ref.dtype)


@functools.lru_cache(maxsize=1)
def _is_v7x():
    # Gate the N-split (two TensorCores per chip) on v7x only; on single-TC
    # v5e/v6e the split is just a serial loop adding per-step overhead.
    try:
        kind = jax.devices()[0].device_kind.lower()
        return ("v7" in kind) or ("7x" in kind)
    except Exception:  # pragma: no cover - defensive; default to no split
        return False


def prepare_affine_style_params(weight, bias):
    """One-time (init-time) parameter preparation — NOT in the per-step hot path.

    Args:
      weight: (2 * n_channel, dim_latent) nn.Linear weight (PyTorch layout).
      bias:   (2 * n_channel,) nn.Linear bias.

    Returns:
      weight_t: (dim_latent, C2_pad) f32, transposed and zero-padded so that
                C2_pad is a multiple of 128 (lane-dense MXU N dim / stores).
      bias_row: (1, C2_pad) f32, zero-padded to match.
      c2_out:   original 2 * n_channel (Python int) for slicing the output.
    """
    c2, d = weight.shape
    c2_pad = ((c2 + 127) // 128) * 128

    w_f32 = weight if weight.dtype == jnp.float32 else weight.astype(jnp.float32)
    b_f32 = bias if bias.dtype == jnp.float32 else bias.astype(jnp.float32)

    weight_t = jnp.zeros((d, c2_pad), jnp.float32).at[:, :c2].set(jnp.transpose(w_f32))
    bias_row = jnp.zeros((1, c2_pad), jnp.float32).at[0, :c2].set(b_f32)
    return weight_t, bias_row, int(c2)


@functools.partial(jax.jit, static_argnames=("c2_out",))
def affine_style(w, weight_t, bias_row, *, c2_out):
    """AffineStyle forward.

    Args:
      w:        (B, dim_latent) intermediate latent vectors.
      weight_t: (dim_latent, C2_pad) prepared weight (see prepare_affine_style_params).
      bias_row: (1, C2_pad) prepared bias.
      c2_out:   original 2 * n_channel.

    Returns:
      (B, 2 * n_channel, 1, 1) style tensor (matches `style.unsqueeze(2).unsqueeze(3)`).
    """
    B, D = w.shape
    C2p = weight_t.shape[1]

    w_in = w if w.dtype == jnp.float32 else w.astype(jnp.float32)

    # Batch tiling: whole batch in one block when it fits (block dim == array
    # dim satisfies the sublane constraint); otherwise 512-row tiles so large
    # batches pipeline and amortize the ~0.35us per-grid-step overhead.
    tb = B if B <= 512 else 512
    grid_b = pl.cdiv(B, tb)

    # v7x only: when the batch grid has a single step, split the output
    # columns in two so each TensorCore DMAs/computes half the weight.
    split_n = 2 if (_is_v7x() and grid_b == 1 and C2p >= 256 and C2p % 256 == 0) else 1
    tn = C2p // split_n

    cost = pl.CostEstimate(
        flops=2 * B * D * C2p,
        transcendentals=0,
        bytes_accessed=4 * (B * D + D * C2p + C2p + B * C2p),
    )

    out_flat = pl.pallas_call(
        _affine_style_kernel,
        out_shape=jax.ShapeDtypeStruct((B, C2p), jnp.float32),
        grid_spec=pltpu.PrefetchScalarGridSpec(
            num_scalar_prefetch=0,
            grid=(grid_b, split_n),
            in_specs=[
                pl.BlockSpec((tb, D), lambda i, j: (i, 0)),    # latent rows for this tile
                pl.BlockSpec((D, tn), lambda i, j: (0, j)),    # weight column slab
                pl.BlockSpec((1, tn), lambda i, j: (0, j)),    # bias slab
            ],
            out_specs=pl.BlockSpec((tb, tn), lambda i, j: (i, j)),
        ),
        compiler_params=pltpu.CompilerParams(
            dimension_semantics=("parallel", "parallel")),
        cost_estimate=cost,
    )(w_in, weight_t, bias_row)

    # Drop lane padding, then unsqueeze(2).unsqueeze(3) as a metadata reshape.
    return out_flat[:, :c2_out].reshape(B, c2_out, 1, 1)


# ------------------------- pure-JAX reference -------------------------
def _reference(w, weight, bias):
    style = w.astype(jnp.float32) @ weight.astype(jnp.float32).T + bias.astype(jnp.float32)
    return style.reshape(w.shape[0], weight.shape[0], 1, 1)


if __name__ == "__main__":
    B, dim_latent, n_channel = 2, 32, 8
    C2 = 2 * n_channel

    key = jax.random.PRNGKey(0)
    k_w, k_wt = jax.random.split(key, 2)

    # Module parameters. Mirror the PyTorch __init__: bias[:n_channel] = 1,
    # bias[n_channel:] = 0; weight ~ small random values.
    weight = jax.random.normal(k_wt, (C2, dim_latent), jnp.float32) * 0.05
    bias = jnp.concatenate([jnp.ones((n_channel,), jnp.float32),
                            jnp.zeros((n_channel,), jnp.float32)])

    w_lat = jax.random.normal(k_w, (B, dim_latent), jnp.float32)

    # One-time parameter prep (outside the per-step hot path).
    weight_t, bias_row, c2_out = prepare_affine_style_params(weight, bias)

    out = affine_style(w_lat, weight_t, bias_row, c2_out=c2_out)
    out = jax.block_until_ready(out)

    ref = _reference(w_lat, weight, bias)
    assert out.shape == (B, C2, 1, 1)
    assert bool(jnp.allclose(out, ref, atol=1e-5, rtol=1e-5)), \
        "Pallas AffineStyle kernel mismatch vs reference"

    print("KERNEL_OK")
</pallas_src>

<mosaic_0001>
module attributes {stable_mosaic.version = 11 : i64} {
  func.func @_affine_style_kernel(%arg0: i32, %arg1: i32, %arg2: memref<2x32xf32, #tpu.memory_space<vmem>>, %arg3: memref<32x128xf32, #tpu.memory_space<vmem>>, %arg4: memref<1x128xf32, #tpu.memory_space<vmem>>, %arg5: memref<2x128xf32, #tpu.memory_space<vmem>>) attributes {dimension_semantics = [#tpu.dimension_semantics<parallel>, #tpu.dimension_semantics<parallel>], iteration_bounds = array<i64: 1, 1>, scalar_prefetch = 0 : i64, scratch_operands = 0 : i64, tpu.core_type = #tpu.core_type<tc>, window_params = [{transform_indices = @transform_0, window_bounds = array<i64: 2, 32>}, {transform_indices = @transform_1, window_bounds = array<i64: 32, 128>}, {transform_indices = @transform_2, window_bounds = array<i64: 1, 128>}, {transform_indices = @transform_3, window_bounds = array<i64: 2, 128>}]} {
    %c0 = arith.constant 0 : index
    %c0_0 = arith.constant 0 : index
    %0 = vector.load %arg2[%c0, %c0_0] : memref<2x32xf32, #tpu.memory_space<vmem>>, vector<2x32xf32>
    %c0_1 = arith.constant 0 : index
    %c0_2 = arith.constant 0 : index
    %1 = vector.load %arg3[%c0_1, %c0_2] : memref<32x128xf32, #tpu.memory_space<vmem>>, vector<32x128xf32>
    %cst = arith.constant dense<0.000000e+00> : vector<2x128xf32>
    %2 = tpu.matmul %0, %1, %cst {dimension_numbers = #tpu.dot_dimension_numbers<[1], [0], [0], [1], [0, 0, 1, 1], [], []>} : vector<2x32xf32>, vector<32x128xf32>, vector<2x128xf32> -> vector<2x128xf32>
    %c0_3 = arith.constant 0 : index
    %c0_4 = arith.constant 0 : index
    %3 = vector.load %arg4[%c0_3, %c0_4] : memref<1x128xf32, #tpu.memory_space<vmem>>, vector<1x128xf32>
    %4 = vector.broadcast %3 : vector<1x128xf32> to vector<2x128xf32>
    %5 = arith.addf %2, %4 : vector<2x128xf32>
    %c0_5 = arith.constant 0 : index
    %c0_6 = arith.constant 0 : index
    %6 = vector.load %arg5[%c0_5, %c0_6] : memref<2x128xf32, #tpu.memory_space<vmem>>, vector<2x128xf32>
    tpu.vector_store %arg5[%c0_5, %c0_6], %5 {strides = array<i32>} : memref<2x128xf32, #tpu.memory_space<vmem>>, vector<2x128xf32>,
    return
  }
  func.func @transform_0(%arg0: i32, %arg1: i32) -> (i32, i32) {
    %c0_i32 = arith.constant 0 : i32
    %c0_i32_0 = arith.constant 0 : i32
    return %arg0, %c0_i32 : i32, i32
  }
  func.func @transform_1(%arg0: i32, %arg1: i32) -> (i32, i32) {
    %c0_i32 = arith.constant 0 : i32
    %c0_i32_0 = arith.constant 0 : i32
    return %c0_i32, %arg1 : i32, i32
  }
  func.func @transform_2(%arg0: i32, %arg1: i32) -> (i32, i32) {
    %c0_i32 = arith.constant 0 : i32
    %c0_i32_0 = arith.constant 0 : i32
    return %c0_i32, %arg1 : i32, i32
  }
  func.func @transform_3(%arg0: i32, %arg1: i32) -> (i32, i32) {
    %c0_i32 = arith.constant 0 : i32
    return %arg0, %arg1 : i32, i32
  }
}

</mosaic_0001>

<llo_original>
// kernel: affine_style.1
$region0: #{affine_style.1}
  #allocation0 [shape = 'u32[]', space=smem, size = 0x4, offset = 0x4, fixed_abs, tag = 'smem constant byte address 0x4 - core index']
  #allocation1 [shape = 'u32[144,128]{1,0:T(1,128)}', space=vmem, size = 0x12000, scoped, tag = 'internal scratch']
  %s0 = inlined_call_operand.hbm [shape: f32[2,32], index: 0, kind: input, shape index: {}]
  %s1 = inlined_call_operand.hbm [shape: f32[32,128], index: 1, kind: input, shape index: {}]
  %s2 = inlined_call_operand.vmem [shape: f32[1,128], index: 2, kind: input, shape index: {}]
  %s3 = inlined_call_operand.hbm [shape: f32[2,128], index: 3, kind: output, shape index: {}]
  %s4 = sld [smem:[#allocation0]]
  $region30: #{affine_style.1} parent=0
    _
  %s6 = ssub.s32 1, %s4
  %s7 = scalar_select 0, %s6, %s4
  $region1: #{affine_style.1} parent=0
    #allocation2 [shape = 'u8[1024]{0}', space=vmem, size = 0x400, scoped, tag = 'input window, operand 0, single buffered']
    #allocation3 [shape = 's32[1]{0}', space=sflag, size = 0x4, scoped, tag = 'scoped memory for affine_style.1']
    #allocation4 [shape = 's32[1]{0}', space=sflag, size = 0x4, scoped, tag = 'scoped memory for affine_style.1']
    #allocation5 [shape = 'u8[16384]{0}', space=vmem, size = 0x4000, scoped, tag = 'input window, operand 1, single buffered']
    #allocation6 [shape = 's32[1]{0}', space=sflag, size = 0x4, scoped, tag = 'scoped memory for affine_style.1']
    #allocation7 [shape = 'u8[1024]{0}', space=vmem, size = 0x400, scoped, tag = 'output window, operand 0, single buffered']
    %8 = vsyncpa [#allocation3], 0
    %9 = vsyncpa [#allocation6], 0
    %10 = vsyncpa [#allocation4], 0
    // Predicated region
    $region2: #{affine_style.1} parent=1 // pred_check
      _
    $region3: #{affine_style.1} parent=1 // pred_check_branch
      %12 = sbr.rel (0) target = $region5
    $region4: #{affine_style.1} parent=1 // pred_region
      %s14 = ssub.s32 32, 32
      %15 = vsyncadd [#allocation3], %s14
      %s17 = sshll.u32 [#allocation2], 4
      %s18 = int_to_ptr.vmem [resolvable:$true] %s17
      %20 = dma.hbm_to_vmem [thread:$0]  %s0, 32, %s18, [#allocation3]
    $region5: #{affine_style.1} parent=1 // pred_fallthru
      _
    // Predicated region
    $region6: #{affine_style.1} parent=1 // pred_check
      _
    $region7: #{affine_style.1} parent=1 // pred_check_branch
      %22 = sbr.rel (0) target = $region9
    $region8: #{affine_style.1} parent=1 // pred_region
      %s24 = ssub.s32 512, 512
      %25 = vsyncadd [#allocation6], %s24
      %s26 = sshll.u32 [#allocation5], 4
      %s27 = int_to_ptr.vmem [resolvable:$true] %s26
      %32 = dma.hbm_to_vmem [thread:$0]  %s1, 512, %s27, [#allocation6], 128, 128, 8
    $region9: #{affine_style.1} parent=1 // pred_fallthru
      _
    // Predicated region
    $region10: #{affine_style.1} parent=1 // pred_check
      _
    $region11: #{affine_style.1} parent=1 // pred_check_branch
      %34 = sbr.rel (0) target = $region13
    $region12: #{affine_style.1} parent=1 // pred_region
      _
    $region13: #{affine_style.1} parent=1 // pred_fallthru
      _
    // Predicated region
    $region14: #{affine_style.1} parent=1 // pred_check
      _
    $region15: #{affine_style.1} parent=1 // pred_check_branch
      %36 = sbr.rel (0) target = $region17
    $region16: #{affine_style.1} parent=1 // pred_region
      %37 = dma.done [#allocation3], 32
    $region17: #{affine_style.1} parent=1 // pred_fallthru
      _
    // Predicated region
    $region18: #{affine_style.1} parent=1 // pred_check
      _
    $region19: #{affine_style.1} parent=1 // pred_check_branch
      %39 = sbr.rel (0) target = $region21
    $region20: #{affine_style.1} parent=1 // pred_region
      %40 = dma.done [#allocation6], 512
    $region21: #{affine_style.1} parent=1 // pred_fallthru
      _
    %v41 = vld [vmem:[#allocation2] sm:$0x3]
    %v42 = vld [vmem:[#allocation5] sm:$0xff]
    %v43 = vld [vmem:[#allocation5 + $0x8] sm:$0xff]
    %v44 = vld [vmem:[#allocation5 + $0x10] sm:$0xff]
    %v45 = vld [vmem:[#allocation5 + $0x18] sm:$0xff]
    %v46 = vld [vmem:[%s2] sm:$0x1]
    %v48 = vlaneseq
    %v49 = vshrl.u32 %v48, 7
    %v50 = vsub.s32 0, %v49
    %v51 = vrot.slane %v46, %v50
    %vm53 = vcmask 261120
    %v55 = vsel %vm53, %v41, 0
    %57 = vmatprep.subr.mxu0 0.0
    %58 = vmatpush1.msra.mxu0 %v42
    %59 = vmatprep.subr.mxu0 0.0
    %60 = vmatpush1.msra.mxu0 %v43
    %61 = vmatprep.subr.mxu0 0.0
    %62 = vmatpush1.msra.mxu0 %v44
    %63 = vmatprep.subr.mxu0 0.0
    %64 = vmatpush1.msra.mxu0 %v45
    %65 = vmatprep.subr.mxu0 0.0
    %66 = vmatpush1.msra.mxu0 0.0
    %67 = vmatprep.subr.mxu0 0.0
    %68 = vmatpush1.msra.mxu0 0.0
    %69 = vmatprep.subr.mxu0 0.0
    %70 = vmatpush1.msra.mxu0 0.0
    %71 = vmatprep.subr.mxu0 0.0
    %72 = vmatpush1.msra.mxu0 0.0
    %73 = vmatprep.subr.mxu0 0.0
    %74 = vmatpush1.msra.mxu0 0.0
    %75 = vmatprep.subr.mxu0 0.0
    %76 = vmatpush1.msra.mxu0 0.0
    %77 = vmatprep.subr.mxu0 0.0
    %78 = vmatpush1.msra.mxu0 0.0
    %79 = vmatprep.subr.mxu0 0.0
    %80 = vmatpush1.msra.mxu0 0.0
    %81 = vmatprep.subr.mxu0 0.0
    %82 = vmatpush1.msra.mxu0 0.0
    %83 = vmatprep.subr.mxu0 0.0
    %84 = vmatpush1.msra.mxu0 0.0
    %85 = vmatprep.subr.mxu0 0.0
    %86 = vmatpush1.msra.mxu0 0.0
    %87 = vmatprep.subr.mxu0 0.0
    %88 = vmatpush1.msra.mxu0 0.0
    %89 = vmatprep.subr.mxu0 0.0
    %90 = vmatpush1.msra.mxu0 0.0
    %91 = vmatprep.subr.mxu0 0.0
    %92 = vmatpush1.msra.mxu0 0.0
    %93 = vmatprep.subr.mxu0 0.0
    %94 = vmatpush1.msra.mxu0 0.0
    %95 = vmatprep.subr.mxu0 0.0
    %96 = vmatpush1.msra.mxu0 0.0
    %97 = vmatprep.subr.mxu0 0.0
    %98 = vmatpush1.msra.mxu0 0.0
    %99 = vmatprep.subr.mxu0 0.0
    %100 = vmatpush1.msra.mxu0 0.0
    %101 = vmatprep.subr.mxu0 0.0
    %102 = vmatpush1.msra.mxu0 0.0
    %103 = vmatprep.subr.mxu0 0.0
    %104 = vmatpush1.msra.mxu0 0.0
    %105 = vmatprep.subr.mxu0 0.0
    %106 = vmatpush1.msra.mxu0 0.0
    %107 = vmatprep.subr.mxu0 0.0
    %108 = vmatpush1.msra.mxu0 0.0
    %109 = vmatprep.subr.mxu0 0.0
    %110 = vmatpush1.msra.mxu0 0.0
    %111 = vmatprep.subr.mxu0 0.0
    %112 = vmatpush1.msra.mxu0 0.0
    %113 = vmatprep.subr.mxu0 0.0
    %114 = vmatpush1.msra.mxu0 0.0
    %115 = vmatprep.subr.mxu0 0.0
    %116 = vmatpush1.msra.mxu0 0.0
    %117 = vmatprep.subr.mxu0 0.0
    %118 = vmatpush1.msra.mxu0 0.0
    %119 = vmatprep.subr.mxu0 0.0
    %120 = vmatpush1.msra.mxu0 0.0
    %121 = vmatprep.mubr.f32.mxu0 0.0
    %122 = vmatmul.mubr.f32.gmra.mrb[0].mxu0 %v55
    %v123 = vpop.f32.mrb[0].mxu0
    %v124 = vadd.f32 %v51, %v123
    %v125 = vpop.f32.mrb[0].mxu0
    %126 = vdwg.mxu0
    %127 = vst [vmem:[#allocation7] sm:$0x3] %v124
    // Predicated region
    $region22: #{affine_style.1} parent=1 // pred_check
      _
    $region23: #{affine_style.1} parent=1 // pred_check_branch
      %129 = sbr.rel (0) target = $region25
    $region24: #{affine_style.1} parent=1 // pred_region
      %s131 = ssub.s32 32, 32
      %132 = vsyncadd [#allocation4], %s131
      %s134 = sshll.u32 [#allocation7], 4
      %s135 = int_to_ptr.vmem [resolvable:$true] %s134
      %137 = dma.vmem_to_hbm [thread:$0]  %s135, 32, %s3, [#allocation4]
    $region25: #{affine_style.1} parent=1 // pred_fallthru
      _
    // Predicated region
    $region26: #{affine_style.1} parent=1 // pred_check
      _
    $region27: #{affine_style.1} parent=1 // pred_check_branch
      %139 = sbr.rel (0) target = $region29
    $region28: #{affine_style.1} parent=1 // pred_region
      %140 = dma.done [#allocation4], 32
    $region29: #{affine_style.1} parent=1 // pred_fallthru
      _
    %141 = vsyncpa [#allocation3], 1
    %142 = vsyncpa [#allocation6], 1
    %143 = vsyncpa [#allocation4], 1

</llo_original>
